<compile_context>
chip_gen: v7x
topology: tpu7x:2x2x1
jax: 0.10.0
libtpu: 0.0.40
codegen_flags: <defaults>
</compile_context>

<pallas_src>
import jax
import jax.numpy as jnp
import numpy as np
from jax.experimental import pallas as pl
from jax.experimental.pallas import tpu as pltpu


def _time_embedding_kernel(t_ref,      # VMEM (B, 1)           int32  timesteps (1-based)
                           small_ref,  # VMEM (4, E_pad)       f32    [freq | phase | b1 | b2]
                           w_ref,      # VMEM (D+E_pad, E_pad) f32    [w1 ; w2 padded]
                           out_ref):   # VMEM (B, E)           f32
    E_pad = w_ref.shape[1]
    D = w_ref.shape[0] - E_pad
    E = out_ref.shape[1]

    # Static ref views into the two packed parameter buffers (zero-cost).
    freq = small_ref[0:1, 0:D]          # (1, D)
    phase = small_ref[1:2, 0:D]         # (1, D)  [0,...,0, pi/2,...,pi/2]
    b1 = small_ref[2:3, :]              # (1, E_pad)
    b2 = small_ref[3:4, 0:E]            # (1, E)

    # Sinusoidal features computed on the fly (identical to the frozen embedding rows):
    #   x = [sin((t-1)*f) | cos((t-1)*f)] = sin((t-1)*f + phase)   -> one sin, no select.
    tvals = (t_ref[...] - 1).astype(jnp.float32)                   # (B, 1)  forward does t - 1
    x = jnp.sin(tvals * freq + phase)                              # (B, D)  f32

    # Linear 1 (f32 MXU passes) + exact GELU (erf form) in f32.  Padded hidden cols stay 0.
    h = jnp.dot(x, w_ref[0:D, :],
                preferred_element_type=jnp.float32,
                precision=jax.lax.Precision.HIGHEST) + b1          # (B, E_pad)
    inv_sqrt2 = jnp.float32(0.7071067811865476)
    h = 0.5 * h * (1.0 + jax.lax.erf(h * inv_sqrt2))

    # Linear 2: only the first E output columns of the padded w2 block are used.
    out = jnp.dot(h, w_ref[D:, 0:E],
                  preferred_element_type=jnp.float32,
                  precision=jax.lax.Precision.HIGHEST) + b2        # (B, E)
    out_ref[...] = out.astype(out_ref.dtype)


def prepare_time_embedding_params(time_dim, w1, b1, w2, b2, lane=128):
    """One-time prep: pack everything into 2 buffers.

    w1: (D, E) f32, b1: (E,) f32, w2: (E, E) f32, b2: (E,) f32  with D = 2*(time_dim//2).
    Returns:
      small:    (4, E_pad) f32  rows = [freq | phase | b1 | b2]
      w_packed: (D + E_pad, E_pad) f32  rows 0:D = w1 (cols padded), rows D: = w2 (padded)
    """
    half_dim = time_dim // 2
    D = 2 * half_dim
    E = w1.shape[1]
    E_pad = ((E + lane - 1) // lane) * lane

    freqs = jnp.exp(-(jnp.arange(0, time_dim, 2, dtype=jnp.float32) / jnp.float32(time_dim))
                    * jnp.log(jnp.float32(10000.0)))[:half_dim]          # (half_dim,)
    freq_row = jnp.zeros((E_pad,), jnp.float32).at[:D].set(jnp.concatenate([freqs, freqs]))
    phase_row = jnp.zeros((E_pad,), jnp.float32).at[half_dim:D].set(jnp.float32(np.pi / 2))
    b1_row = jnp.zeros((E_pad,), jnp.float32).at[:E].set(b1)
    b2_row = jnp.zeros((E_pad,), jnp.float32).at[:E].set(b2)
    small = jnp.stack([freq_row, phase_row, b1_row, b2_row], axis=0)     # (4, E_pad)

    w1_p = jnp.zeros((D, E_pad), jnp.float32).at[:, :E].set(w1)
    w2_p = jnp.zeros((E_pad, E_pad), jnp.float32).at[:E, :E].set(w2)
    w_packed = jnp.concatenate([w1_p, w2_p], axis=0)                     # (D + E_pad, E_pad)
    return small, w_packed


def time_embedding_forward(t, small, w_packed, *, out_dim):
    """t: (B,) integer timesteps (1-based, as in the PyTorch forward). Returns (B, out_dim) f32."""
    B = t.shape[0]
    t2d = t.astype(jnp.int32).reshape(B, 1)
    return pl.pallas_call(
        _time_embedding_kernel,
        out_shape=jax.ShapeDtypeStruct((B, out_dim), jnp.float32),
        in_specs=[pl.BlockSpec(memory_space=pltpu.MemorySpace.VMEM)] * 3,
        out_specs=pl.BlockSpec(memory_space=pltpu.MemorySpace.VMEM),
    )(t2d, small, w_packed)


def make_sinusoidal_table(time_dim, timesteps):
    """Reference-only: reproduces the frozen nn.Embedding table from TimeEmbedding.__init__."""
    half_dim = time_dim // 2
    freqs = jnp.arange(0, time_dim, 2, dtype=jnp.float32) / jnp.float32(time_dim)
    freqs = jnp.exp(-freqs * jnp.log(jnp.float32(10000.0)))[:half_dim]
    steps = jnp.arange(timesteps, dtype=jnp.float32)
    ang = steps[:, None] * freqs[None, :]
    return jnp.concatenate([jnp.sin(ang), jnp.cos(ang)], axis=1).reshape(timesteps, 2 * half_dim)


def xavier_uniform(key, fan_in, fan_out):
    bound = float(np.sqrt(6.0 / (fan_in + fan_out)))
    return jax.random.uniform(key, (fan_in, fan_out), jnp.float32, -bound, bound)


if __name__ == "__main__":
    # Small, module-consistent shapes.
    time_dim = 32          # -> D = 2*(time_dim//2) = 32 input features to the MLP
    embedding_dim = 64
    timesteps = 1000
    batch = 8

    half_dim = time_dim // 2
    D = half_dim * 2
    E = embedding_dim

    key = jax.random.PRNGKey(0)
    k1, k2, kt = jax.random.split(key, 3)

    w1 = xavier_uniform(k1, D, E)          # Linear(D, E) stored as x @ W
    b1 = jnp.zeros((E,), jnp.float32)      # module fills biases with 0
    w2 = xavier_uniform(k2, E, E)          # Linear(E, E)
    b2 = jnp.zeros((E,), jnp.float32)

    small, w_packed = prepare_time_embedding_params(time_dim, w1, b1, w2, b2)

    # Timesteps in [1, timesteps] (forward subtracts 1 before the sinusoidal features).
    t = jax.random.randint(kt, (batch,), 1, timesteps + 1, dtype=jnp.int32)

    fwd = jax.jit(time_embedding_forward, static_argnames=("out_dim",))
    out = fwd(t, small, w_packed, out_dim=E)
    out = jax.block_until_ready(out)

    # Pure-JAX f32 reference (table lookup path, matching the PyTorch module).
    table = make_sinusoidal_table(time_dim, timesteps)
    x_ref = table[t - 1]
    h_ref = jnp.dot(x_ref, w1, precision=jax.lax.Precision.HIGHEST) + b1
    h_ref = 0.5 * h_ref * (1.0 + jax.lax.erf(h_ref * jnp.float32(0.7071067811865476)))
    ref = jnp.dot(h_ref, w2, precision=jax.lax.Precision.HIGHEST) + b2
    # Residual error comes only from sin(a + pi/2) vs cos(a) at ~1000-rad f32 arguments
    # and sin-implementation differences (kernel EUP vs XLA); matmuls are f32-exact now.
    np.testing.assert_allclose(np.asarray(out), np.asarray(ref), rtol=2e-3, atol=2e-3)

    print("KERNEL_OK")
</pallas_src>

<mosaic_0001>
module attributes {stable_mosaic.version = 11 : i64} {
  func.func @_time_embedding_kernel(%arg0: memref<8x1xi32, #tpu.memory_space<vmem>>, %arg1: memref<4x128xf32, #tpu.memory_space<vmem>>, %arg2: memref<160x128xf32, #tpu.memory_space<vmem>>, %arg3: memref<8x64xf32, #tpu.memory_space<vmem>>) attributes {dimension_semantics = [], scalar_prefetch = 0 : i64, scratch_operands = 0 : i64, tpu.core_type = #tpu.core_type<tc>} {
    %c0 = arith.constant 0 : index
    %c0_0 = arith.constant 0 : index
    %0 = vector.load %arg1[%c0, %c0_0] : memref<4x128xf32, #tpu.memory_space<vmem>>, vector<1x32xf32>
    %c1 = arith.constant 1 : index
    %c0_1 = arith.constant 0 : index
    %1 = vector.load %arg1[%c1, %c0_1] : memref<4x128xf32, #tpu.memory_space<vmem>>, vector<1x32xf32>
    %c2 = arith.constant 2 : index
    %c0_2 = arith.constant 0 : index
    %2 = vector.load %arg1[%c2, %c0_2] : memref<4x128xf32, #tpu.memory_space<vmem>>, vector<1x128xf32>
    %c3 = arith.constant 3 : index
    %c0_3 = arith.constant 0 : index
    %3 = vector.load %arg1[%c3, %c0_3] : memref<4x128xf32, #tpu.memory_space<vmem>>, vector<1x64xf32>
    %c0_4 = arith.constant 0 : index
    %c0_5 = arith.constant 0 : index
    %4 = vector.load %arg0[%c0_4, %c0_5] : memref<8x1xi32, #tpu.memory_space<vmem>>, vector<8x1xi32>
    %c1_i32 = arith.constant 1 : i32
    %5 = vector.broadcast %c1_i32 : i32 to vector<8x1xi32>
    %6 = arith.subi %4, %5 : vector<8x1xi32>
    %7 = arith.sitofp %6 : vector<8x1xi32> to vector<8x1xf32>
    %8 = vector.broadcast %7 : vector<8x1xf32> to vector<8x32xf32>
    %9 = vector.broadcast %0 : vector<1x32xf32> to vector<8x32xf32>
    %10 = arith.mulf %8, %9 : vector<8x32xf32>
    %11 = vector.broadcast %1 : vector<1x32xf32> to vector<8x32xf32>
    %12 = arith.addf %10, %11 : vector<8x32xf32>
    %13 = math.sin %12 : vector<8x32xf32>
    %c0_6 = arith.constant 0 : index
    %c0_7 = arith.constant 0 : index
    %14 = vector.load %arg2[%c0_6, %c0_7] : memref<160x128xf32, #tpu.memory_space<vmem>>, vector<32x128xf32>
    %cst = arith.constant dense<0.000000e+00> : vector<8x128xf32>
    %15 = tpu.matmul %13, %14, %cst {dimension_numbers = #tpu.dot_dimension_numbers<[1], [0], [0], [1], [0, 0, 1, 1], [], []>, precision = #tpu.contract_precision<fp32>} : vector<8x32xf32>, vector<32x128xf32>, vector<8x128xf32> -> vector<8x128xf32>
    %16 = vector.broadcast %2 : vector<1x128xf32> to vector<8x128xf32>
    %17 = arith.addf %15, %16 : vector<8x128xf32>
    %cst_8 = arith.constant 5.000000e-01 : f32
    %18 = vector.broadcast %cst_8 : f32 to vector<8x128xf32>
    %19 = arith.mulf %18, %17 : vector<8x128xf32>
    %cst_9 = arith.constant 0.707106769 : f32
    %20 = vector.broadcast %cst_9 : f32 to vector<8x128xf32>
    %21 = arith.mulf %17, %20 : vector<8x128xf32>
    %22 = math.erf %21 : vector<8x128xf32>
    %cst_10 = arith.constant 1.000000e+00 : f32
    %23 = vector.broadcast %cst_10 : f32 to vector<8x128xf32>
    %24 = arith.addf %23, %22 : vector<8x128xf32>
    %25 = arith.mulf %19, %24 : vector<8x128xf32>
    %c32 = arith.constant 32 : index
    %c0_11 = arith.constant 0 : index
    %26 = vector.load %arg2[%c32, %c0_11] : memref<160x128xf32, #tpu.memory_space<vmem>>, vector<128x64xf32>
    %cst_12 = arith.constant dense<0.000000e+00> : vector<8x64xf32>
    %27 = tpu.matmul %25, %26, %cst_12 {dimension_numbers = #tpu.dot_dimension_numbers<[1], [0], [0], [1], [0, 0, 1, 1], [], []>, precision = #tpu.contract_precision<fp32>} : vector<8x128xf32>, vector<128x64xf32>, vector<8x64xf32> -> vector<8x64xf32>
    %28 = vector.broadcast %3 : vector<1x64xf32> to vector<8x64xf32>
    %29 = arith.addf %27, %28 : vector<8x64xf32>
    %c0_13 = arith.constant 0 : index
    %c0_14 = arith.constant 0 : index
    %30 = vector.load %arg3[%c0_13, %c0_14] : memref<8x64xf32, #tpu.memory_space<vmem>>, vector<8x64xf32>
    tpu.vector_store %arg3[%c0_13, %c0_14], %29 {strides = array<i32>} : memref<8x64xf32, #tpu.memory_space<vmem>>, vector<8x64xf32>,
    return
  }
}

</mosaic_0001>

<llo_original>
// kernel: time_embedding_forward.1
$region0: #{time_embedding_forward.1}
  #allocation0 [shape = 'u32[]', space=smem, size = 0x4, offset = 0x4, fixed_abs, tag = 'smem constant byte address 0x4 - core index']
  #allocation1 [shape = 'u32[144,128]{1,0:T(1,128)}', space=vmem, size = 0x12000, scoped, tag = 'internal scratch']
  %s0 = inlined_call_operand.vmem [shape: s32[8,1], index: 0, kind: input, shape index: {}]
  %s1 = inlined_call_operand.vmem [shape: f32[4,128], index: 1, kind: input, shape index: {}]
  %s2 = inlined_call_operand.hbm [shape: f32[160,128], index: 2, kind: input, shape index: {}]
  %s3 = inlined_call_operand.hbm [shape: f32[8,64], index: 3, kind: output, shape index: {}]
  %s4 = sld [smem:[#allocation0]]
  $region26: #{time_embedding_forward.1} parent=0
    _
  %s6 = ssub.s32 1, %s4
  %s7 = scalar_select 0, %s6, %s4
  $region1: #{time_embedding_forward.1} parent=0
    #allocation2 [shape = 'u8[81920]{0}', space=vmem, size = 0x14000, scoped, tag = 'input window, operand 2, single buffered']
    #allocation3 [shape = 's32[1]{0}', space=sflag, size = 0x4, scoped, tag = 'scoped memory for time_embedding_forward.1']
    #allocation4 [shape = 's32[1]{0}', space=sflag, size = 0x4, scoped, tag = 'scoped memory for time_embedding_forward.1']
    #allocation5 [shape = 'u8[4096]{0}', space=vmem, size = 0x1000, scoped, tag = 'output window, operand 0, single buffered']
    %8 = vsyncpa [#allocation3], 0
    %9 = vsyncpa [#allocation4], 0
    // Predicated region
    $region2: #{time_embedding_forward.1} parent=1 // pred_check
      _
    $region3: #{time_embedding_forward.1} parent=1 // pred_check_branch
      %11 = sbr.rel (0) target = $region5
    $region4: #{time_embedding_forward.1} parent=1 // pred_region
      _
    $region5: #{time_embedding_forward.1} parent=1 // pred_fallthru
      _
    // Predicated region
    $region6: #{time_embedding_forward.1} parent=1 // pred_check
      _
    $region7: #{time_embedding_forward.1} parent=1 // pred_check_branch
      %13 = sbr.rel (0) target = $region9
    $region8: #{time_embedding_forward.1} parent=1 // pred_region
      _
    $region9: #{time_embedding_forward.1} parent=1 // pred_fallthru
      _
    // Predicated region
    $region10: #{time_embedding_forward.1} parent=1 // pred_check
      _
    $region11: #{time_embedding_forward.1} parent=1 // pred_check_branch
      %15 = sbr.rel (0) target = $region13
    $region12: #{time_embedding_forward.1} parent=1 // pred_region
      %s17 = ssub.s32 2560, 2560
      %18 = vsyncadd [#allocation3], %s17
      %s19 = sshll.u32 [#allocation2], 4
      %s20 = int_to_ptr.vmem [resolvable:$true] %s19
      %25 = dma.hbm_to_vmem [thread:$0]  %s2, 2560, %s20, [#allocation3], 128, 128, 8
    $region13: #{time_embedding_forward.1} parent=1 // pred_fallthru
      _
    // Predicated region
    $region14: #{time_embedding_forward.1} parent=1 // pred_check
      _
    $region15: #{time_embedding_forward.1} parent=1 // pred_check_branch
      %27 = sbr.rel (0) target = $region17
    $region16: #{time_embedding_forward.1} parent=1 // pred_region
      %28 = dma.done [#allocation3], 2560
    $region17: #{time_embedding_forward.1} parent=1 // pred_fallthru
      _
    %v29 = vld [vmem:[%s1] sm:$0x1]
    %v30 = vld [vmem:[%s1 + $0x1] sm:$0x1]
    %v31 = vld [vmem:[%s1 + $0x2] sm:$0x1]
    %v32 = vld [vmem:[%s1 + $0x3] sm:$0x1]
    %v33 = vld [vmem:[%s0] sm:$0xff]
    %v34 = vsub.s32 %v33, 1
    %v35 = vcvt.s32.f32 %v34
    %37 = vset.pattern.permute.xlu0 0
    %38 = vperm.xlu0 %37, %v35
    %v39 = vpop.permute.xlu0 %38
    %v41 = vlaneseq
    %v42 = vshrl.u32 %v41, 7
    %v43 = vsub.s32 0, %v42
    %v44 = vrot.slane %v29, %v43
    %v45 = vmul.f32 %v39, %v44
    %v46 = vlaneseq
    %v47 = vshrl.u32 %v46, 7
    %v48 = vsub.s32 0, %v47
    %v49 = vrot.slane %v30, %v48
    %v50 = vadd.f32 %v45, %v49
    %v51 = vand.u32 2147483647, %v50
    %vm52 = vcmp.le.f32.partialorder %v51, 0.7853982
    %vm53 = vcmp.lt.s32.totalorder %v50, 0
    %v54 = vand.u32 %v50, 2139095040
    %v55 = vshrl.u32 %v54, 23
    %v56 = vsub.s32 %v55, 127
    %v57 = vand.u32 2147483647, %v50
    %v58 = vand.u32 %v57, 8388607
    %v59 = vor.u32 %v58, 8388608
    %v60 = vsub.s32 0, %v59
    %v61 = vadd.s32 %v56, 1
    %vm62 = vcmp.gt.s32.totalorder %v61, 0
    %v63 = vsel %vm62, %v61, 0
    %v64 = vshrl.u32 %v63, 5
    %v65 = vand.u32 %v63, 31
    %v66 = vsub.s32 32, %v65
    %v67 = vshrl.u32 683565275, %v66
    %v68 = vshll.u32 683565275, %v65
    %v69 = vshrl.u32 2475754826, %v66
    %v70 = vor.u32 %v68, %v69
    %v71 = vshll.u32 2475754826, %v65
    %v72 = vshrl.u32 2131351028, %v66
    %v73 = vor.u32 %v71, %v72
    %v74 = vshll.u32 2131351028, %v65
    %v75 = vshrl.u32 2102212464, %v66
    %v76 = vor.u32 %v74, %v75
    %v77 = vshll.u32 2102212464, %v65
    %v78 = vshrl.u32 920167782, %v66
    %v79 = vor.u32 %v77, %v78
    %v80 = vshll.u32 920167782, %v65
    %v81 = vshrl.u32 1326507024, %v66
    %v82 = vor.u32 %v80, %v81
    %vm83 = vcmp.lt.s32.totalorder %v64, 1
    %vm84 = vcmp.lt.s32.totalorder %v64, 2
    %vm85 = vcmp.lt.s32.totalorder %v64, 3
    %vm86 = vcmp.lt.s32.totalorder %v64, 4
    %v87 = vsel %vm83, %v67, %v70
    %v88 = vsel %vm86, %v76, 2102212464
    %v89 = vsel %vm85, %v73, %v88
    %v90 = vsel %vm84, %v87, %v89
    %v91 = vsel %vm83, %v70, %v73
    %v92 = vsel %vm86, %v79, 920167782
    %v93 = vsel %vm85, %v76, %v92
    %v94 = vsel %vm84, %v91, %v93
    %v95 = vsel %vm83, %v73, %v76
    %v96 = vsel %vm86, %v82, 1326507024
    %v97 = vsel %vm85, %v79, %v96
    %v98 = vsel %vm84, %v95, %v97
    %v99 = vshll.u32 %v59, 8
    %v100 = vmul.u32.u64.compose %v99, %v98
    %v101 = vextract.low.u32 %v100
    %v102 = vextract.high.u32 %v100
    %v103 = vmul.u32.u64.compose %v99, %v94
    %v104 = vextract.low.u32 %v103
    %v105 = vextract.high.u32 %v103
    %v106 = vmul.u32 %v99, %v90
    %v107 = vadd.s32 %v102, %v104
    %vm108 = vc.u32 %v102, %v104
    %v109 = vadd.s32 %v105, 1
    %v110 = vsel %vm108, %v109, %v105
    %v111 = vadd.s32 %v106, %v110
    %v112 = vadd.s32 %v111, 536870912
    %v113 = vshrl.u32 %v112, 30
    %v114 = vshll.u32 %v113, 30
    %v115 = vsub.s32 %v111, %v114
    %vm116 = vcmp.lt.s32.totalorder %v115, 0
    %v117 = vsub.s32 0, %v115
    %v118 = vsel %vm116, %v117, %v115
    %v119 = vclz %v118
    %v120 = vsub.s32 %v119, 2
    %vm121 = vcmp.gt.s32.totalorder 0, %v120
    %v122 = vsel %vm121, 0, %v120
    %v123 = vsub.s32 32, %v122
    %v124 = vshll.u32 %v115, %v122
    %v125 = vshrl.u32 %v107, %v123
    %v126 = vor.u32 %v124, %v125
    %v127 = vsub.s32 4294967266, %v122
    %v128 = vadd.s32 %v127, 127
    %v129 = vshll.u32 %v128, 23
    %v130 = vor.u32 4788187, %v129
    %v131 = vand.u32 2147483647, %v130
    %v133 = vcvt.s32.f32 %v126
    %v134 = vmul.f32 %v133, %v131
    %v135 = vxor.u32 %v134, 2147483648
    %v136 = vsel %vm53, %v135, %v134
    %v137 = vsub.s32 4, %v113
    %v138 = vsel %vm53, %v137, %v113
    %v139 = vsel %vm52, %v50, %v136
    %v140 = vsel %vm52, 0, %v138
    %v141 = vcosq.f32.pop %v139
    %v142 = vsinq.f32.pop %v139
    %vm143 = vweird.f32 %v50
    %v144 = vadd.s32 %v140, 3
    %v145 = vand.u32 %v144, 3
    %vm146 = vcmp.lt.s32.totalorder %v145, 2
    %vm147 = vcmp.eq.s32.totalorder %v145, 0
    %v148 = vxor.u32 %v142, 2147483648
    %v149 = vsel %vm147, %v141, %v148
    %vm150 = vcmp.eq.s32.totalorder %v145, 2
    %v151 = vxor.u32 %v141, 2147483648
    %v152 = vsel %vm150, %v151, %v142
    %v153 = vsel %vm146, %v149, %v152
    %v154 = vsel %vm143, nan, %v153
    %v155 = vld [vmem:[#allocation2] sm:$0xff]
    %v156 = vld [vmem:[#allocation2 + $0x8] sm:$0xff]
    %v157 = vld [vmem:[#allocation2 + $0x10] sm:$0xff]
    %v158 = vld [vmem:[#allocation2 + $0x18] sm:$0xff]
    %v159 = vlaneseq
    %v160 = vshrl.u32 %v159, 7
    %v161 = vsub.s32 0, %v160
    %v162 = vrot.slane %v31, %v161
    %vm163 = vcmask 261120
    %v165 = vsel %vm163, %v154, 0
    %167 = vmatprep.subr.mxu0 0.0
    %v168 = vand.u32 %v155, 4294901760
    %169 = vmatpush1.msra.mxu0 %v168
    %170 = vmatprep.subr.mxu0 0.0
    %v171 = vand.u32 %v156, 4294901760
    %172 = vmatpush1.msra.mxu0 %v171
    %173 = vmatprep.subr.mxu0 0.0
    %v174 = vand.u32 %v157, 4294901760
    %175 = vmatpush1.msra.mxu0 %v174
    %176 = vmatprep.subr.mxu0 0.0
    %v177 = vand.u32 %v158, 4294901760
    %178 = vmatpush1.msra.mxu0 %v177
    %179 = vmatprep.subr.mxu0 0.0
    %180 = vmatpush1.msra.mxu0 0.0
    %181 = vmatprep.subr.mxu0 0.0
    %182 = vmatpush1.msra.mxu0 0.0
    %183 = vmatprep.subr.mxu0 0.0
    %184 = vmatpush1.msra.mxu0 0.0
    %185 = vmatprep.subr.mxu0 0.0
    %186 = vmatpush1.msra.mxu0 0.0
    %187 = vmatprep.subr.mxu0 0.0
    %188 = vmatpush1.msra.mxu0 0.0
    %189 = vmatprep.subr.mxu0 0.0
    %190 = vmatpush1.msra.mxu0 0.0
    %191 = vmatprep.subr.mxu0 0.0
    %192 = vmatpush1.msra.mxu0 0.0
    %193 = vmatprep.subr.mxu0 0.0
    %194 = vmatpush1.msra.mxu0 0.0
    %195 = vmatprep.subr.mxu0 0.0
    %196 = vmatpush1.msra.mxu0 0.0
    %197 = vmatprep.subr.mxu0 0.0
    %198 = vmatpush1.msra.mxu0 0.0
    %199 = vmatprep.subr.mxu0 0.0
    %200 = vmatpush1.msra.mxu0 0.0
    %201 = vmatprep.subr.mxu0 0.0
    %202 = vmatpush1.msra.mxu0 0.0
    %203 = vmatprep.subr.mxu0 0.0
    %204 = vmatpush1.msra.mxu0 0.0
    %205 = vmatprep.subr.mxu0 0.0
    %206 = vmatpush1.msra.mxu0 0.0
    %207 = vmatprep.subr.mxu0 0.0
    %208 = vmatpush1.msra.mxu0 0.0
    %209 = vmatprep.subr.mxu0 0.0
    %210 = vmatpush1.msra.mxu0 0.0
    %211 = vmatprep.subr.mxu0 0.0
    %212 = vmatpush1.msra.mxu0 0.0
    %213 = vmatprep.subr.mxu0 0.0
    %214 = vmatpush1.msra.mxu0 0.0
    %215 = vmatprep.subr.mxu0 0.0
    %216 = vmatpush1.msra.mxu0 0.0
    %217 = vmatprep.subr.mxu0 0.0
    %218 = vmatpush1.msra.mxu0 0.0
    %219 = vmatprep.subr.mxu0 0.0
    %220 = vmatpush1.msra.mxu0 0.0
    %221 = vmatprep.subr.mxu0 0.0
    %222 = vmatpush1.msra.mxu0 0.0
    %223 = vmatprep.subr.mxu0 0.0
    %224 = vmatpush1.msra.mxu0 0.0
    %225 = vmatprep.subr.mxu0 0.0
    %226 = vmatpush1.msra.mxu0 0.0
    %227 = vmatprep.subr.mxu0 0.0
    %228 = vmatpush1.msra.mxu0 0.0
    %229 = vmatprep.subr.mxu0 0.0
    %230 = vmatpush1.msra.mxu0 0.0
    %231 = vmatprep.subr.mxu0 0.0
    %232 = vmatpush1.msra.mxu0 0.0
    %233 = vmatprep.subr.mxu0 0.0
    %234 = vmatpush1.msra.mxu0 0.0
    %235 = vmatprep.mubr.f32.mxu0 0.0
    %v236 = vand.u32 %v165, 4294901760
    %v237 = vsub.f32 %v165, %v236
    %v238 = vand.u32 %v237, 4294901760
    %v239 = vsub.f32 %v237, %v238
    %v240 = vand.u32 %v239, 4294901760
    %241 = vmatmul.mubr.f32.gmra.mrb[0].mxu0 %v240
    %v242 = vpop.f32.mrb[0].mxu0
    %v243 = vadd.f32 %v162, %v242
    %v244 = vpop.f32.mrb[0].mxu0
    %245 = vdwg.mxu0
    %246 = vmatprep.subr.mxu0 0.0
    %v247 = vand.u32 %v155, 4294901760
    %v248 = vsub.f32 %v155, %v247
    %v249 = vand.u32 %v248, 4294901760
    %v250 = vsub.f32 %v248, %v249
    %v251 = vand.u32 %v250, 4294901760
    %252 = vmatpush1.msra.mxu0 %v251
    %253 = vmatprep.subr.mxu0 0.0
    %v254 = vand.u32 %v156, 4294901760
    %v255 = vsub.f32 %v156, %v254
    %v256 = vand.u32 %v255, 4294901760
    %v257 = vsub.f32 %v255, %v256
    %v258 = vand.u32 %v257, 4294901760
    %259 = vmatpush1.msra.mxu0 %v258
    %260 = vmatprep.subr.mxu0 0.0
    %v261 = vand.u32 %v157, 4294901760
    %v262 = vsub.f32 %v157, %v261
    %v263 = vand.u32 %v262, 4294901760
    %v264 = vsub.f32 %v262, %v263
    %v265 = vand.u32 %v264, 4294901760
    %266 = vmatpush1.msra.mxu0 %v265
    %267 = vmatprep.subr.mxu0 0.0
    %v268 = vand.u32 %v158, 4294901760
    %v269 = vsub.f32 %v158, %v268
    %v270 = vand.u32 %v269, 4294901760
    %v271 = vsub.f32 %v269, %v270
    %v272 = vand.u32 %v271, 4294901760
    %273 = vmatpush1.msra.mxu0 %v272
    %274 = vmatprep.subr.mxu0 0.0
    %275 = vmatpush1.msra.mxu0 0.0
    %276 = vmatprep.subr.mxu0 0.0
    %277 = vmatpush1.msra.mxu0 0.0
    %278 = vmatprep.subr.mxu0 0.0
    %279 = vmatpush1.msra.mxu0 0.0
    %280 = vmatprep.subr.mxu0 0.0
    %281 = vmatpush1.msra.mxu0 0.0
    %282 = vmatprep.subr.mxu0 0.0
    %283 = vmatpush1.msra.mxu0 0.0
    %284 = vmatprep.subr.mxu0 0.0
    %285 = vmatpush1.msra.mxu0 0.0
    %286 = vmatprep.subr.mxu0 0.0
    %287 = vmatpush1.msra.mxu0 0.0
    %288 = vmatprep.subr.mxu0 0.0
    %289 = vmatpush1.msra.mxu0 0.0
    %290 = vmatprep.subr.mxu0 0.0
    %291 = vmatpush1.msra.mxu0 0.0
    %292 = vmatprep.subr.mxu0 0.0
    %293 = vmatpush1.msra.mxu0 0.0
    %294 = vmatprep.subr.mxu0 0.0
    %295 = vmatpush1.msra.mxu0 0.0
    %296 = vmatprep.subr.mxu0 0.0
    %297 = vmatpush1.msra.mxu0 0.0
    %298 = vmatprep.subr.mxu0 0.0
    %299 = vmatpush1.msra.mxu0 0.0
    %300 = vmatprep.subr.mxu0 0.0
    %301 = vmatpush1.msra.mxu0 0.0
    %302 = vmatprep.subr.mxu0 0.0
    %303 = vmatpush1.msra.mxu0 0.0
    %304 = vmatprep.subr.mxu0 0.0
    %305 = vmatpush1.msra.mxu0 0.0
    %306 = vmatprep.subr.mxu0 0.0
    %307 = vmatpush1.msra.mxu0 0.0
    %308 = vmatprep.subr.mxu0 0.0
    %309 = vmatpush1.msra.mxu0 0.0
    %310 = vmatprep.subr.mxu0 0.0
    %311 = vmatpush1.msra.mxu0 0.0
    %312 = vmatprep.subr.mxu0 0.0
    %313 = vmatpush1.msra.mxu0 0.0
    %314 = vmatprep.subr.mxu0 0.0
    %315 = vmatpush1.msra.mxu0 0.0
    %316 = vmatprep.subr.mxu0 0.0
    %317 = vmatpush1.msra.mxu0 0.0
    %318 = vmatprep.subr.mxu0 0.0
    %319 = vmatpush1.msra.mxu0 0.0
    %320 = vmatprep.subr.mxu0 0.0
    %321 = vmatpush1.msra.mxu0 0.0
    %322 = vmatprep.subr.mxu0 0.0
    %323 = vmatpush1.msra.mxu0 0.0
    %324 = vmatprep.subr.mxu0 0.0
    %325 = vmatpush1.msra.mxu0 0.0
    %326 = vmatprep.subr.mxu0 0.0
    %327 = vmatpush1.msra.mxu0 0.0
    %328 = vmatprep.subr.mxu0 0.0
    %329 = vmatpush1.msra.mxu0 0.0
    %330 = vmatprep.mubr.f32.mxu0 0.0
    %v331 = vand.u32 %v165, 4294901760
    %332 = vmatmul.mubr.f32.gmra.mrb[0].mxu0 %v331
    %v333 = vpop.f32.mrb[0].mxu0
    %v334 = vadd.f32 %v243, %v333
    %v335 = vpop.f32.mrb[0].mxu0
    %336 = vdwg.mxu0
    %337 = vmatprep.subr.mxu0 0.0
    %v338 = vand.u32 %v155, 4294901760
    %v339 = vsub.f32 %v155, %v338
    %340 = vmatpush1.msra.mxu0 %v339
    %341 = vmatprep.subr.mxu0 0.0
    %v342 = vand.u32 %v156, 4294901760
    %v343 = vsub.f32 %v156, %v342
    %344 = vmatpush1.msra.mxu0 %v343
    %345 = vmatprep.subr.mxu0 0.0
    %v346 = vand.u32 %v157, 4294901760
    %v347 = vsub.f32 %v157, %v346
    %348 = vmatpush1.msra.mxu0 %v347
    %349 = vmatprep.subr.mxu0 0.0
    %v350 = vand.u32 %v158, 4294901760
    %v351 = vsub.f32 %v158, %v350
    %352 = vmatpush1.msra.mxu0 %v351
    %353 = vmatprep.subr.mxu0 0.0
    %354 = vmatpush1.msra.mxu0 0.0
    %355 = vmatprep.subr.mxu0 0.0
    %356 = vmatpush1.msra.mxu0 0.0
    %357 = vmatprep.subr.mxu0 0.0
    %358 = vmatpush1.msra.mxu0 0.0
    %359 = vmatprep.subr.mxu0 0.0
    %360 = vmatpush1.msra.mxu0 0.0
    %361 = vmatprep.subr.mxu0 0.0
    %362 = vmatpush1.msra.mxu0 0.0
    %363 = vmatprep.subr.mxu0 0.0
    %364 = vmatpush1.msra.mxu0 0.0
    %365 = vmatprep.subr.mxu0 0.0
    %366 = vmatpush1.msra.mxu0 0.0
    %367 = vmatprep.subr.mxu0 0.0
    %368 = vmatpush1.msra.mxu0 0.0
    %369 = vmatprep.subr.mxu0 0.0
    %370 = vmatpush1.msra.mxu0 0.0
    %371 = vmatprep.subr.mxu0 0.0
    %372 = vmatpush1.msra.mxu0 0.0
    %373 = vmatprep.subr.mxu0 0.0
    %374 = vmatpush1.msra.mxu0 0.0
    %375 = vmatprep.subr.mxu0 0.0
    %376 = vmatpush1.msra.mxu0 0.0
    %377 = vmatprep.subr.mxu0 0.0
    %378 = vmatpush1.msra.mxu0 0.0
    %379 = vmatprep.subr.mxu0 0.0
    %380 = vmatpush1.msra.mxu0 0.0
    %381 = vmatprep.subr.mxu0 0.0
    %382 = vmatpush1.msra.mxu0 0.0
    %383 = vmatprep.subr.mxu0 0.0
    %384 = vmatpush1.msra.mxu0 0.0
    %385 = vmatprep.subr.mxu0 0.0
    %386 = vmatpush1.msra.mxu0 0.0
    %387 = vmatprep.subr.mxu0 0.0
    %388 = vmatpush1.msra.mxu0 0.0
    %389 = vmatprep.subr.mxu0 0.0
    %390 = vmatpush1.msra.mxu0 0.0
    %391 = vmatprep.subr.mxu0 0.0
    %392 = vmatpush1.msra.mxu0 0.0
    %393 = vmatprep.subr.mxu0 0.0
    %394 = vmatpush1.msra.mxu0 0.0
    %395 = vmatprep.subr.mxu0 0.0
    %396 = vmatpush1.msra.mxu0 0.0
    %397 = vmatprep.subr.mxu0 0.0
    %398 = vmatpush1.msra.mxu0 0.0
    %399 = vmatprep.subr.mxu0 0.0
    %400 = vmatpush1.msra.mxu0 0.0
    %401 = vmatprep.subr.mxu0 0.0
    %402 = vmatpush1.msra.mxu0 0.0
    %403 = vmatprep.subr.mxu0 0.0
    %404 = vmatpush1.msra.mxu0 0.0
    %405 = vmatprep.subr.mxu0 0.0
    %406 = vmatpush1.msra.mxu0 0.0
    %407 = vmatprep.subr.mxu0 0.0
    %408 = vmatpush1.msra.mxu0 0.0
    %409 = vmatprep.mubr.f32.mxu0 0.0
    %v410 = vand.u32 %v165, 4294901760
    %v411 = vsub.f32 %v165, %v410
    %412 = vmatmul.mubr.f32.gmra.mrb[0].mxu0 %v411
    %v413 = vpop.f32.mrb[0].mxu0
    %v414 = vadd.f32 %v334, %v413
    %v415 = vpop.f32.mrb[0].mxu0
    %416 = vdwg.mxu0
    %417 = vmatprep.subr.mxu0 0.0
    %v418 = vand.u32 %v155, 4294901760
    %419 = vmatpush1.msra.mxu0 %v418
    %420 = vmatprep.subr.mxu0 0.0
    %v421 = vand.u32 %v156, 4294901760
    %422 = vmatpush1.msra.mxu0 %v421
    %423 = vmatprep.subr.mxu0 0.0
    %v424 = vand.u32 %v157, 4294901760
    %425 = vmatpush1.msra.mxu0 %v424
    %426 = vmatprep.subr.mxu0 0.0
    %v427 = vand.u32 %v158, 4294901760
    %428 = vmatpush1.msra.mxu0 %v427
    %429 = vmatprep.subr.mxu0 0.0
    %430 = vmatpush1.msra.mxu0 0.0
    %431 = vmatprep.subr.mxu0 0.0
    %432 = vmatpush1.msra.mxu0 0.0
    %433 = vmatprep.subr.mxu0 0.0
    %434 = vmatpush1.msra.mxu0 0.0
    %435 = vmatprep.subr.mxu0 0.0
    %436 = vmatpush1.msra.mxu0 0.0
    %437 = vmatprep.subr.mxu0 0.0
    %438 = vmatpush1.msra.mxu0 0.0
    %439 = vmatprep.subr.mxu0 0.0
    %440 = vmatpush1.msra.mxu0 0.0
    %441 = vmatprep.subr.mxu0 0.0
    %442 = vmatpush1.msra.mxu0 0.0
    %443 = vmatprep.subr.mxu0 0.0
    %444 = vmatpush1.msra.mxu0 0.0
    %445 = vmatprep.subr.mxu0 0.0
    %446 = vmatpush1.msra.mxu0 0.0
    %447 = vmatprep.subr.mxu0 0.0
    %448 = vmatpush1.msra.mxu0 0.0
    %449 = vmatprep.subr.mxu0 0.0
    %450 = vmatpush1.msra.mxu0 0.0
    %451 = vmatprep.subr.mxu0 0.0
    %452 = vmatpush1.msra.mxu0 0.0
    %453 = vmatprep.subr.mxu0 0.0
    %454 = vmatpush1.msra.mxu0 0.0
    %455 = vmatprep.subr.mxu0 0.0
    %456 = vmatpush1.msra.mxu0 0.0
    %457 = vmatprep.subr.mxu0 0.0
    %458 = vmatpush1.msra.mxu0 0.0
    %459 = vmatprep.subr.mxu0 0.0
    %460 = vmatpush1.msra.mxu0 0.0
    %461 = vmatprep.subr.mxu0 0.0
    %462 = vmatpush1.msra.mxu0 0.0
    %463 = vmatprep.subr.mxu0 0.0
    %464 = vmatpush1.msra.mxu0 0.0
    %465 = vmatprep.subr.mxu0 0.0
    %466 = vmatpush1.msra.mxu0 0.0
    %467 = vmatprep.subr.mxu0 0.0
    %468 = vmatpush1.msra.mxu0 0.0
    %469 = vmatprep.subr.mxu0 0.0
    %470 = vmatpush1.msra.mxu0 0.0
    %471 = vmatprep.subr.mxu0 0.0
    %472 = vmatpush1.msra.mxu0 0.0
    %473 = vmatprep.subr.mxu0 0.0
    %474 = vmatpush1.msra.mxu0 0.0
    %475 = vmatprep.subr.mxu0 0.0
    %476 = vmatpush1.msra.mxu0 0.0
    %477 = vmatprep.subr.mxu0 0.0
    %478 = vmatpush1.msra.mxu0 0.0
    %479 = vmatprep.subr.mxu0 0.0
    %480 = vmatpush1.msra.mxu0 0.0
    %481 = vmatprep.subr.mxu0 0.0
    %482 = vmatpush1.msra.mxu0 0.0
    %483 = vmatprep.subr.mxu0 0.0
    %484 = vmatpush1.msra.mxu0 0.0
    %485 = vmatprep.mubr.f32.mxu0 0.0
    %v486 = vand.u32 %v165, 4294901760
    %v487 = vsub.f32 %v165, %v486
    %v488 = vand.u32 %v487, 4294901760
    %489 = vmatmul.mubr.f32.gmra.mrb[0].mxu0 %v488
    %v490 = vpop.f32.mrb[0].mxu0
    %v491 = vadd.f32 %v414, %v490
    %v492 = vpop.f32.mrb[0].mxu0
    %493 = vdwg.mxu0
    %494 = vmatprep.subr.mxu0 0.0
    %v495 = vand.u32 %v155, 4294901760
    %v496 = vsub.f32 %v155, %v495
    %v497 = vand.u32 %v496, 4294901760
    %498 = vmatpush1.msra.mxu0 %v497
    %499 = vmatprep.subr.mxu0 0.0
    %v500 = vand.u32 %v156, 4294901760
    %v501 = vsub.f32 %v156, %v500
    %v502 = vand.u32 %v501, 4294901760
    %503 = vmatpush1.msra.mxu0 %v502
    %504 = vmatprep.subr.mxu0 0.0
    %v505 = vand.u32 %v157, 4294901760
    %v506 = vsub.f32 %v157, %v505
    %v507 = vand.u32 %v506, 4294901760
    %508 = vmatpush1.msra.mxu0 %v507
    %509 = vmatprep.subr.mxu0 0.0
    %v510 = vand.u32 %v158, 4294901760
    %v511 = vsub.f32 %v158, %v510
    %v512 = vand.u32 %v511, 4294901760
    %513 = vmatpush1.msra.mxu0 %v512
    %514 = vmatprep.subr.mxu0 0.0
    %515 = vmatpush1.msra.mxu0 0.0
    %516 = vmatprep.subr.mxu0 0.0
    %517 = vmatpush1.msra.mxu0 0.0
    %518 = vmatprep.subr.mxu0 0.0
    %519 = vmatpush1.msra.mxu0 0.0
    %520 = vmatprep.subr.mxu0 0.0
    %521 = vmatpush1.msra.mxu0 0.0
    %522 = vmatprep.subr.mxu0 0.0
    %523 = vmatpush1.msra.mxu0 0.0
    %524 = vmatprep.subr.mxu0 0.0
    %525 = vmatpush1.msra.mxu0 0.0
    %526 = vmatprep.subr.mxu0 0.0
    %527 = vmatpush1.msra.mxu0 0.0
    %528 = vmatprep.subr.mxu0 0.0
    %529 = vmatpush1.msra.mxu0 0.0
    %530 = vmatprep.subr.mxu0 0.0
    %531 = vmatpush1.msra.mxu0 0.0
    %532 = vmatprep.subr.mxu0 0.0
    %533 = vmatpush1.msra.mxu0 0.0
    %534 = vmatprep.subr.mxu0 0.0
    %535 = vmatpush1.msra.mxu0 0.0
    %536 = vmatprep.subr.mxu0 0.0
    %537 = vmatpush1.msra.mxu0 0.0
    %538 = vmatprep.subr.mxu0 0.0
    %539 = vmatpush1.msra.mxu0 0.0
    %540 = vmatprep.subr.mxu0 0.0
    %541 = vmatpush1.msra.mxu0 0.0
    %542 = vmatprep.subr.mxu0 0.0
    %543 = vmatpush1.msra.mxu0 0.0
    %544 = vmatprep.subr.mxu0 0.0
    %545 = vmatpush1.msra.mxu0 0.0
    %546 = vmatprep.subr.mxu0 0.0
    %547 = vmatpush1.msra.mxu0 0.0
    %548 = vmatprep.subr.mxu0 0.0
    %549 = vmatpush1.msra.mxu0 0.0
    %550 = vmatprep.subr.mxu0 0.0
    %551 = vmatpush1.msra.mxu0 0.0
    %552 = vmatprep.subr.mxu0 0.0
    %553 = vmatpush1.msra.mxu0 0.0
    %554 = vmatprep.subr.mxu0 0.0
    %555 = vmatpush1.msra.mxu0 0.0
    %556 = vmatprep.subr.mxu0 0.0
    %557 = vmatpush1.msra.mxu0 0.0
    %558 = vmatprep.subr.mxu0 0.0
    %559 = vmatpush1.msra.mxu0 0.0
    %560 = vmatprep.subr.mxu0 0.0
    %561 = vmatpush1.msra.mxu0 0.0
    %562 = vmatprep.subr.mxu0 0.0
    %563 = vmatpush1.msra.mxu0 0.0
    %564 = vmatprep.subr.mxu0 0.0
    %565 = vmatpush1.msra.mxu0 0.0
    %566 = vmatprep.subr.mxu0 0.0
    %567 = vmatpush1.msra.mxu0 0.0
    %568 = vmatprep.subr.mxu0 0.0
    %569 = vmatpush1.msra.mxu0 0.0
    %570 = vmatprep.mubr.f32.mxu0 0.0
    %v571 = vand.u32 %v165, 4294901760
    %572 = vmatmul.mubr.f32.gmra.mrb[0].mxu0 %v571
    %v573 = vpop.f32.mrb[0].mxu0
    %v574 = vadd.f32 %v491, %v573
    %v575 = vpop.f32.mrb[0].mxu0
    %576 = vdwg.mxu0
    %577 = vmatprep.subr.mxu0 0.0
    %v578 = vand.u32 %v155, 4294901760
    %579 = vmatpush1.msra.mxu0 %v578
    %580 = vmatprep.subr.mxu0 0.0
    %v581 = vand.u32 %v156, 4294901760
    %582 = vmatpush1.msra.mxu0 %v581
    %583 = vmatprep.subr.mxu0 0.0
    %v584 = vand.u32 %v157, 4294901760
    %585 = vmatpush1.msra.mxu0 %v584
    %586 = vmatprep.subr.mxu0 0.0
    %v587 = vand.u32 %v158, 4294901760
    %588 = vmatpush1.msra.mxu0 %v587
    %589 = vmatprep.subr.mxu0 0.0
    %590 = vmatpush1.msra.mxu0 0.0
    %591 = vmatprep.subr.mxu0 0.0
    %592 = vmatpush1.msra.mxu0 0.0
    %593 = vmatprep.subr.mxu0 0.0
    %594 = vmatpush1.msra.mxu0 0.0
    %595 = vmatprep.subr.mxu0 0.0
    %596 = vmatpush1.msra.mxu0 0.0
    %597 = vmatprep.subr.mxu0 0.0
    %598 = vmatpush1.msra.mxu0 0.0
    %599 = vmatprep.subr.mxu0 0.0
    %600 = vmatpush1.msra.mxu0 0.0
    %601 = vmatprep.subr.mxu0 0.0
    %602 = vmatpush1.msra.mxu0 0.0
    %603 = vmatprep.subr.mxu0 0.0
    %604 = vmatpush1.msra.mxu0 0.0
    %605 = vmatprep.subr.mxu0 0.0
    %606 = vmatpush1.msra.mxu0 0.0
    %607 = vmatprep.subr.mxu0 0.0
    %608 = vmatpush1.msra.mxu0 0.0
    %609 = vmatprep.subr.mxu0 0.0
    %610 = vmatpush1.msra.mxu0 0.0
    %611 = vmatprep.subr.mxu0 0.0
    %612 = vmatpush1.msra.mxu0 0.0
    %613 = vmatprep.subr.mxu0 0.0
    %614 = vmatpush1.msra.mxu0 0.0
    %615 = vmatprep.subr.mxu0 0.0
    %616 = vmatpush1.msra.mxu0 0.0
    %617 = vmatprep.subr.mxu0 0.0
    %618 = vmatpush1.msra.mxu0 0.0
    %619 = vmatprep.subr.mxu0 0.0
    %620 = vmatpush1.msra.mxu0 0.0
    %621 = vmatprep.subr.mxu0 0.0
    %622 = vmatpush1.msra.mxu0 0.0
    %623 = vmatprep.subr.mxu0 0.0
    %624 = vmatpush1.msra.mxu0 0.0
    %625 = vmatprep.subr.mxu0 0.0
    %626 = vmatpush1.msra.mxu0 0.0
    %627 = vmatprep.subr.mxu0 0.0
    %628 = vmatpush1.msra.mxu0 0.0
    %629 = vmatprep.subr.mxu0 0.0
    %630 = vmatpush1.msra.mxu0 0.0
    %631 = vmatprep.subr.mxu0 0.0
    %632 = vmatpush1.msra.mxu0 0.0
    %633 = vmatprep.subr.mxu0 0.0
    %634 = vmatpush1.msra.mxu0 0.0
    %635 = vmatprep.subr.mxu0 0.0
    %636 = vmatpush1.msra.mxu0 0.0
    %637 = vmatprep.subr.mxu0 0.0
    %638 = vmatpush1.msra.mxu0 0.0
    %639 = vmatprep.subr.mxu0 0.0
    %640 = vmatpush1.msra.mxu0 0.0
    %641 = vmatprep.subr.mxu0 0.0
    %642 = vmatpush1.msra.mxu0 0.0
    %643 = vmatprep.subr.mxu0 0.0
    %644 = vmatpush1.msra.mxu0 0.0
    %645 = vmatprep.mubr.f32.mxu0 0.0
    %v646 = vand.u32 %v165, 4294901760
    %647 = vmatmul.mubr.f32.gmra.mrb[0].mxu0 %v646
    %v648 = vpop.f32.mrb[0].mxu0
    %v649 = vadd.f32 %v574, %v648
    %v650 = vpop.f32.mrb[0].mxu0
    %651 = vdwg.mxu0
    %v652 = vmul.f32 %v649, 0.5
    %v653 = vmul.f32 %v649, 0.70710677
    %v654 = verf.f32.pop %v653
    %v655 = vadd.f32 %v654, 1.0
    %v656 = vmul.f32 %v652, %v655
    %v657 = vld [vmem:[#allocation2 + $0x20] sm:$0xff]
    %v658 = vld [vmem:[#allocation2 + $0x28] sm:$0xff]
    %v659 = vld [vmem:[#allocation2 + $0x30] sm:$0xff]
    %v660 = vld [vmem:[#allocation2 + $0x38] sm:$0xff]
    %v661 = vld [vmem:[#allocation2 + $0x40] sm:$0xff]
    %v662 = vld [vmem:[#allocation2 + $0x48] sm:$0xff]
    %v663 = vld [vmem:[#allocation2 + $0x50] sm:$0xff]
    %v664 = vld [vmem:[#allocation2 + $0x58] sm:$0xff]
    %v665 = vld [vmem:[#allocation2 + $0x60] sm:$0xff]
    %v666 = vld [vmem:[#allocation2 + $0x68] sm:$0xff]
    %v667 = vld [vmem:[#allocation2 + $0x70] sm:$0xff]
    %v668 = vld [vmem:[#allocation2 + $0x78] sm:$0xff]
    %v669 = vld [vmem:[#allocation2 + $0x80] sm:$0xff]
    %v670 = vld [vmem:[#allocation2 + $0x88] sm:$0xff]
    %v671 = vld [vmem:[#allocation2 + $0x90] sm:$0xff]
    %v672 = vld [vmem:[#allocation2 + $0x98] sm:$0xff]
    %v673 = vlaneseq
    %v674 = vshrl.u32 %v673, 7
    %v675 = vsub.s32 0, %v674
    %v676 = vrot.slane %v32, %v675
    %677 = vmatprep.subr.mxu0 0.0
    %v678 = vand.u32 %v657, 4294901760
    %679 = vmatpush1.msra.mxu0 %v678
    %680 = vmatprep.subr.mxu0 0.0
    %v681 = vand.u32 %v658, 4294901760
    %682 = vmatpush1.msra.mxu0 %v681
    %683 = vmatprep.subr.mxu0 0.0
    %v684 = vand.u32 %v659, 4294901760
    %685 = vmatpush1.msra.mxu0 %v684
    %686 = vmatprep.subr.mxu0 0.0
    %v687 = vand.u32 %v660, 4294901760
    %688 = vmatpush1.msra.mxu0 %v687
    %689 = vmatprep.subr.mxu0 0.0
    %v690 = vand.u32 %v661, 4294901760
    %691 = vmatpush1.msra.mxu0 %v690
    %692 = vmatprep.subr.mxu0 0.0
    %v693 = vand.u32 %v662, 4294901760
    %694 = vmatpush1.msra.mxu0 %v693
    %695 = vmatprep.subr.mxu0 0.0
    %v696 = vand.u32 %v663, 4294901760
    %697 = vmatpush1.msra.mxu0 %v696
    %698 = vmatprep.subr.mxu0 0.0
    %v699 = vand.u32 %v664, 4294901760
    %700 = vmatpush1.msra.mxu0 %v699
    %701 = vmatprep.subr.mxu0 0.0
    %v702 = vand.u32 %v665, 4294901760
    %703 = vmatpush1.msra.mxu0 %v702
    %704 = vmatprep.subr.mxu0 0.0
    %v705 = vand.u32 %v666, 4294901760
    %706 = vmatpush1.msra.mxu0 %v705
    %707 = vmatprep.subr.mxu0 0.0
    %v708 = vand.u32 %v667, 4294901760
    %709 = vmatpush1.msra.mxu0 %v708
    %710 = vmatprep.subr.mxu0 0.0
    %v711 = vand.u32 %v668, 4294901760
    %712 = vmatpush1.msra.mxu0 %v711
    %713 = vmatprep.subr.mxu0 0.0
    %v714 = vand.u32 %v669, 4294901760
    %715 = vmatpush1.msra.mxu0 %v714
    %716 = vmatprep.subr.mxu0 0.0
    %v717 = vand.u32 %v670, 4294901760
    %718 = vmatpush1.msra.mxu0 %v717
    %719 = vmatprep.subr.mxu0 0.0
    %v720 = vand.u32 %v671, 4294901760
    %721 = vmatpush1.msra.mxu0 %v720
    %722 = vmatprep.subr.mxu0 0.0
    %v723 = vand.u32 %v672, 4294901760
    %724 = vmatpush1.msra.mxu0 %v723
    %725 = vmatprep.subr.mxu0 0.0
    %726 = vmatpush1.msra.mxu0 0.0
    %727 = vmatprep.subr.mxu0 0.0
    %728 = vmatpush1.msra.mxu0 0.0
    %729 = vmatprep.subr.mxu0 0.0
    %730 = vmatpush1.msra.mxu0 0.0
    %731 = vmatprep.subr.mxu0 0.0
    %732 = vmatpush1.msra.mxu0 0.0
    %733 = vmatprep.subr.mxu0 0.0
    %734 = vmatpush1.msra.mxu0 0.0
    %735 = vmatprep.subr.mxu0 0.0
    %736 = vmatpush1.msra.mxu0 0.0
    %737 = vmatprep.subr.mxu0 0.0
    %738 = vmatpush1.msra.mxu0 0.0
    %739 = vmatprep.subr.mxu0 0.0
    %740 = vmatpush1.msra.mxu0 0.0
    %741 = vmatprep.subr.mxu0 0.0
    %742 = vmatpush1.msra.mxu0 0.0
    %743 = vmatprep.subr.mxu0 0.0
    %744 = vmatpush1.msra.mxu0 0.0
    %745 = vmatprep.subr.mxu0 0.0
    %746 = vmatpush1.msra.mxu0 0.0
    %747 = vmatprep.subr.mxu0 0.0
    %748 = vmatpush1.msra.mxu0 0.0
    %749 = vmatprep.subr.mxu0 0.0
    %750 = vmatpush1.msra.mxu0 0.0
    %751 = vmatprep.subr.mxu0 0.0
    %752 = vmatpush1.msra.mxu0 0.0
    %753 = vmatprep.subr.mxu0 0.0
    %754 = vmatpush1.msra.mxu0 0.0
    %755 = vmatprep.subr.mxu0 0.0
    %756 = vmatpush1.msra.mxu0 0.0
    %757 = vmatprep.mubr.f32.mxu0 0.0
    %v758 = vand.u32 %v656, 4294901760
    %v759 = vsub.f32 %v656, %v758
    %v760 = vand.u32 %v759, 4294901760
    %v761 = vsub.f32 %v759, %v760
    %v762 = vand.u32 %v761, 4294901760
    %763 = vmatmul.mubr.f32.gmra.mrb[0].mxu0 %v762
    %v764 = vpop.f32.mrb[0].mxu0
    %v765 = vadd.f32 %v676, %v764
    %v766 = vpop.f32.mrb[0].mxu0
    %767 = vdwg.mxu0
    %768 = vmatprep.subr.mxu0 0.0
    %v769 = vand.u32 %v657, 4294901760
    %v770 = vsub.f32 %v657, %v769
    %v771 = vand.u32 %v770, 4294901760
    %v772 = vsub.f32 %v770, %v771
    %v773 = vand.u32 %v772, 4294901760
    %774 = vmatpush1.msra.mxu0 %v773
    %775 = vmatprep.subr.mxu0 0.0
    %v776 = vand.u32 %v658, 4294901760
    %v777 = vsub.f32 %v658, %v776
    %v778 = vand.u32 %v777, 4294901760
    %v779 = vsub.f32 %v777, %v778
    %v780 = vand.u32 %v779, 4294901760
    %781 = vmatpush1.msra.mxu0 %v780
    %782 = vmatprep.subr.mxu0 0.0
    %v783 = vand.u32 %v659, 4294901760
    %v784 = vsub.f32 %v659, %v783
    %v785 = vand.u32 %v784, 4294901760
    %v786 = vsub.f32 %v784, %v785
    %v787 = vand.u32 %v786, 4294901760
    %788 = vmatpush1.msra.mxu0 %v787
    %789 = vmatprep.subr.mxu0 0.0
    %v790 = vand.u32 %v660, 4294901760
    %v791 = vsub.f32 %v660, %v790
    %v792 = vand.u32 %v791, 4294901760
    %v793 = vsub.f32 %v791, %v792
    %v794 = vand.u32 %v793, 4294901760
    %795 = vmatpush1.msra.mxu0 %v794
    %796 = vmatprep.subr.mxu0 0.0
    %v797 = vand.u32 %v661, 4294901760
    %v798 = vsub.f32 %v661, %v797
    %v799 = vand.u32 %v798, 4294901760
    %v800 = vsub.f32 %v798, %v799
    %v801 = vand.u32 %v800, 4294901760
    %802 = vmatpush1.msra.mxu0 %v801
    %803 = vmatprep.subr.mxu0 0.0
    %v804 = vand.u32 %v662, 4294901760
    %v805 = vsub.f32 %v662, %v804
    %v806 = vand.u32 %v805, 4294901760
    %v807 = vsub.f32 %v805, %v806
    %v808 = vand.u32 %v807, 4294901760
    %809 = vmatpush1.msra.mxu0 %v808
    %810 = vmatprep.subr.mxu0 0.0
    %v811 = vand.u32 %v663, 4294901760
    %v812 = vsub.f32 %v663, %v811
    %v813 = vand.u32 %v812, 4294901760
    %v814 = vsub.f32 %v812, %v813
    %v815 = vand.u32 %v814, 4294901760
    %816 = vmatpush1.msra.mxu0 %v815
    %817 = vmatprep.subr.mxu0 0.0
    %v818 = vand.u32 %v664, 4294901760
    %v819 = vsub.f32 %v664, %v818
    %v820 = vand.u32 %v819, 4294901760
    %v821 = vsub.f32 %v819, %v820
    %v822 = vand.u32 %v821, 4294901760
    %823 = vmatpush1.msra.mxu0 %v822
    %824 = vmatprep.subr.mxu0 0.0
    %v825 = vand.u32 %v665, 4294901760
    %v826 = vsub.f32 %v665, %v825
    %v827 = vand.u32 %v826, 4294901760
    %v828 = vsub.f32 %v826, %v827
    %v829 = vand.u32 %v828, 4294901760
    %830 = vmatpush1.msra.mxu0 %v829
    %831 = vmatprep.subr.mxu0 0.0
    %v832 = vand.u32 %v666, 4294901760
    %v833 = vsub.f32 %v666, %v832
    %v834 = vand.u32 %v833, 4294901760
    %v835 = vsub.f32 %v833, %v834
    %v836 = vand.u32 %v835, 4294901760
    %837 = vmatpush1.msra.mxu0 %v836
    %838 = vmatprep.subr.mxu0 0.0
    %v839 = vand.u32 %v667, 4294901760
    %v840 = vsub.f32 %v667, %v839
    %v841 = vand.u32 %v840, 4294901760
    %v842 = vsub.f32 %v840, %v841
    %v843 = vand.u32 %v842, 4294901760
    %844 = vmatpush1.msra.mxu0 %v843
    %845 = vmatprep.subr.mxu0 0.0
    %v846 = vand.u32 %v668, 4294901760
    %v847 = vsub.f32 %v668, %v846
    %v848 = vand.u32 %v847, 4294901760
    %v849 = vsub.f32 %v847, %v848
    %v850 = vand.u32 %v849, 4294901760
    %851 = vmatpush1.msra.mxu0 %v850
    %852 = vmatprep.subr.mxu0 0.0
    %v853 = vand.u32 %v669, 4294901760
    %v854 = vsub.f32 %v669, %v853
    %v855 = vand.u32 %v854, 4294901760
    %v856 = vsub.f32 %v854, %v855
    %v857 = vand.u32 %v856, 4294901760
    %858 = vmatpush1.msra.mxu0 %v857
    %859 = vmatprep.subr.mxu0 0.0
    %v860 = vand.u32 %v670, 4294901760
    %v861 = vsub.f32 %v670, %v860
    %v862 = vand.u32 %v861, 4294901760
    %v863 = vsub.f32 %v861, %v862
    %v864 = vand.u32 %v863, 4294901760
    %865 = vmatpush1.msra.mxu0 %v864
    %866 = vmatprep.subr.mxu0 0.0
    %v867 = vand.u32 %v671, 4294901760
    %v868 = vsub.f32 %v671, %v867
    %v869 = vand.u32 %v868, 4294901760
    %v870 = vsub.f32 %v868, %v869
    %v871 = vand.u32 %v870, 4294901760
    %872 = vmatpush1.msra.mxu0 %v871
    %873 = vmatprep.subr.mxu0 0.0
    %v874 = vand.u32 %v672, 4294901760
    %v875 = vsub.f32 %v672, %v874
    %v876 = vand.u32 %v875, 4294901760
    %v877 = vsub.f32 %v875, %v876
    %v878 = vand.u32 %v877, 4294901760
    %879 = vmatpush1.msra.mxu0 %v878
    %880 = vmatprep.subr.mxu0 0.0
    %881 = vmatpush1.msra.mxu0 0.0
    %882 = vmatprep.subr.mxu0 0.0
    %883 = vmatpush1.msra.mxu0 0.0
    %884 = vmatprep.subr.mxu0 0.0
    %885 = vmatpush1.msra.mxu0 0.0
    %886 = vmatprep.subr.mxu0 0.0
    %887 = vmatpush1.msra.mxu0 0.0
    %888 = vmatprep.subr.mxu0 0.0
    %889 = vmatpush1.msra.mxu0 0.0
    %890 = vmatprep.subr.mxu0 0.0
    %891 = vmatpush1.msra.mxu0 0.0
    %892 = vmatprep.subr.mxu0 0.0
    %893 = vmatpush1.msra.mxu0 0.0
    %894 = vmatprep.subr.mxu0 0.0
    %895 = vmatpush1.msra.mxu0 0.0
    %896 = vmatprep.subr.mxu0 0.0
    %897 = vmatpush1.msra.mxu0 0.0
    %898 = vmatprep.subr.mxu0 0.0
    %899 = vmatpush1.msra.mxu0 0.0
    %900 = vmatprep.subr.mxu0 0.0
    %901 = vmatpush1.msra.mxu0 0.0
    %902 = vmatprep.subr.mxu0 0.0
    %903 = vmatpush1.msra.mxu0 0.0
    %904 = vmatprep.subr.mxu0 0.0
    %905 = vmatpush1.msra.mxu0 0.0
    %906 = vmatprep.subr.mxu0 0.0
    %907 = vmatpush1.msra.mxu0 0.0
    %908 = vmatprep.subr.mxu0 0.0
    %909 = vmatpush1.msra.mxu0 0.0
    %910 = vmatprep.subr.mxu0 0.0
    %911 = vmatpush1.msra.mxu0 0.0
    %912 = vmatprep.mubr.f32.mxu0 0.0
    %v913 = vand.u32 %v656, 4294901760
    %914 = vmatmul.mubr.f32.gmra.mrb[0].mxu0 %v913
    %v915 = vpop.f32.mrb[0].mxu0
    %v916 = vadd.f32 %v765, %v915
    %v917 = vpop.f32.mrb[0].mxu0
    %918 = vdwg.mxu0
    %919 = vmatprep.subr.mxu0 0.0
    %v920 = vand.u32 %v657, 4294901760
    %v921 = vsub.f32 %v657, %v920
    %922 = vmatpush1.msra.mxu0 %v921
    %923 = vmatprep.subr.mxu0 0.0
    %v924 = vand.u32 %v658, 4294901760
    %v925 = vsub.f32 %v658, %v924
    %926 = vmatpush1.msra.mxu0 %v925
    %927 = vmatprep.subr.mxu0 0.0
    %v928 = vand.u32 %v659, 4294901760
    %v929 = vsub.f32 %v659, %v928
    %930 = vmatpush1.msra.mxu0 %v929
    %931 = vmatprep.subr.mxu0 0.0
    %v932 = vand.u32 %v660, 4294901760
    %v933 = vsub.f32 %v660, %v932
    %934 = vmatpush1.msra.mxu0 %v933
    %935 = vmatprep.subr.mxu0 0.0
    %v936 = vand.u32 %v661, 4294901760
    %v937 = vsub.f32 %v661, %v936
    %938 = vmatpush1.msra.mxu0 %v937
    %939 = vmatprep.subr.mxu0 0.0
    %v940 = vand.u32 %v662, 4294901760
    %v941 = vsub.f32 %v662, %v940
    %942 = vmatpush1.msra.mxu0 %v941
    %943 = vmatprep.subr.mxu0 0.0
    %v944 = vand.u32 %v663, 4294901760
    %v945 = vsub.f32 %v663, %v944
    %946 = vmatpush1.msra.mxu0 %v945
    %947 = vmatprep.subr.mxu0 0.0
    %v948 = vand.u32 %v664, 4294901760
    %v949 = vsub.f32 %v664, %v948
    %950 = vmatpush1.msra.mxu0 %v949
    %951 = vmatprep.subr.mxu0 0.0
    %v952 = vand.u32 %v665, 4294901760
    %v953 = vsub.f32 %v665, %v952
    %954 = vmatpush1.msra.mxu0 %v953
    %955 = vmatprep.subr.mxu0 0.0
    %v956 = vand.u32 %v666, 4294901760
    %v957 = vsub.f32 %v666, %v956
    %958 = vmatpush1.msra.mxu0 %v957
    %959 = vmatprep.subr.mxu0 0.0
    %v960 = vand.u32 %v667, 4294901760
    %v961 = vsub.f32 %v667, %v960
    %962 = vmatpush1.msra.mxu0 %v961
    %963 = vmatprep.subr.mxu0 0.0
    %v964 = vand.u32 %v668, 4294901760
    %v965 = vsub.f32 %v668, %v964
    %966 = vmatpush1.msra.mxu0 %v965
    %967 = vmatprep.subr.mxu0 0.0
    %v968 = vand.u32 %v669, 4294901760
    %v969 = vsub.f32 %v669, %v968
    %970 = vmatpush1.msra.mxu0 %v969
    %971 = vmatprep.subr.mxu0 0.0
    %v972 = vand.u32 %v670, 4294901760
    %v973 = vsub.f32 %v670, %v972
    %974 = vmatpush1.msra.mxu0 %v973
    %975 = vmatprep.subr.mxu0 0.0
    %v976 = vand.u32 %v671, 4294901760
    %v977 = vsub.f32 %v671, %v976
    %978 = vmatpush1.msra.mxu0 %v977
    %979 = vmatprep.subr.mxu0 0.0
    %v980 = vand.u32 %v672, 4294901760
    %v981 = vsub.f32 %v672, %v980
    %982 = vmatpush1.msra.mxu0 %v981
    %983 = vmatprep.subr.mxu0 0.0
    %984 = vmatpush1.msra.mxu0 0.0
    %985 = vmatprep.subr.mxu0 0.0
    %986 = vmatpush1.msra.mxu0 0.0
    %987 = vmatprep.subr.mxu0 0.0
    %988 = vmatpush1.msra.mxu0 0.0
    %989 = vmatprep.subr.mxu0 0.0
    %990 = vmatpush1.msra.mxu0 0.0
    %991 = vmatprep.subr.mxu0 0.0
    %992 = vmatpush1.msra.mxu0 0.0
    %993 = vmatprep.subr.mxu0 0.0
    %994 = vmatpush1.msra.mxu0 0.0
    %995 = vmatprep.subr.mxu0 0.0
    %996 = vmatpush1.msra.mxu0 0.0
    %997 = vmatprep.subr.mxu0 0.0
    %998 = vmatpush1.msra.mxu0 0.0
    %999 = vmatprep.subr.mxu0 0.0
    %1000 = vmatpush1.msra.mxu0 0.0
    %1001 = vmatprep.subr.mxu0 0.0
    %1002 = vmatpush1.msra.mxu0 0.0
    %1003 = vmatprep.subr.mxu0 0.0
    %1004 = vmatpush1.msra.mxu0 0.0
    %1005 = vmatprep.subr.mxu0 0.0
    %1006 = vmatpush1.msra.mxu0 0.0
    %1007 = vmatprep.subr.mxu0 0.0
    %1008 = vmatpush1.msra.mxu0 0.0
    %1009 = vmatprep.subr.mxu0 0.0
    %1010 = vmatpush1.msra.mxu0 0.0
    %1011 = vmatprep.subr.mxu0 0.0
    %1012 = vmatpush1.msra.mxu0 0.0
    %1013 = vmatprep.subr.mxu0 0.0
    %1014 = vmatpush1.msra.mxu0 0.0
    %1015 = vmatprep.mubr.f32.mxu0 0.0
    %v1016 = vand.u32 %v656, 4294901760
    %v1017 = vsub.f32 %v656, %v1016
    %1018 = vmatmul.mubr.f32.gmra.mrb[0].mxu0 %v1017
    %v1019 = vpop.f32.mrb[0].mxu0
    %v1020 = vadd.f32 %v916, %v1019
    %v1021 = vpop.f32.mrb[0].mxu0
    %1022 = vdwg.mxu0
    %1023 = vmatprep.subr.mxu0 0.0
    %v1024 = vand.u32 %v657, 4294901760
    %1025 = vmatpush1.msra.mxu0 %v1024
    %1026 = vmatprep.subr.mxu0 0.0
    %v1027 = vand.u32 %v658, 4294901760
    %1028 = vmatpush1.msra.mxu0 %v1027
    %1029 = vmatprep.subr.mxu0 0.0
    %v1030 = vand.u32 %v659, 4294901760
    %1031 = vmatpush1.msra.mxu0 %v1030
    %1032 = vmatprep.subr.mxu0 0.0
    %v1033 = vand.u32 %v660, 4294901760
    %1034 = vmatpush1.msra.mxu0 %v1033
    %1035 = vmatprep.subr.mxu0 0.0
    %v1036 = vand.u32 %v661, 4294901760
    %1037 = vmatpush1.msra.mxu0 %v1036
    %1038 = vmatprep.subr.mxu0 0.0
    %v1039 = vand.u32 %v662, 4294901760
    %1040 = vmatpush1.msra.mxu0 %v1039
    %1041 = vmatprep.subr.mxu0 0.0
    %v1042 = vand.u32 %v663, 4294901760
    %1043 = vmatpush1.msra.mxu0 %v1042
    %1044 = vmatprep.subr.mxu0 0.0
    %v1045 = vand.u32 %v664, 4294901760
    %1046 = vmatpush1.msra.mxu0 %v1045
    %1047 = vmatprep.subr.mxu0 0.0
    %v1048 = vand.u32 %v665, 4294901760
    %1049 = vmatpush1.msra.mxu0 %v1048
    %1050 = vmatprep.subr.mxu0 0.0
    %v1051 = vand.u32 %v666, 4294901760
    %1052 = vmatpush1.msra.mxu0 %v1051
    %1053 = vmatprep.subr.mxu0 0.0
    %v1054 = vand.u32 %v667, 4294901760
    %1055 = vmatpush1.msra.mxu0 %v1054
    %1056 = vmatprep.subr.mxu0 0.0
    %v1057 = vand.u32 %v668, 4294901760
    %1058 = vmatpush1.msra.mxu0 %v1057
    %1059 = vmatprep.subr.mxu0 0.0
    %v1060 = vand.u32 %v669, 4294901760
    %1061 = vmatpush1.msra.mxu0 %v1060
    %1062 = vmatprep.subr.mxu0 0.0
    %v1063 = vand.u32 %v670, 4294901760
    %1064 = vmatpush1.msra.mxu0 %v1063
    %1065 = vmatprep.subr.mxu0 0.0
    %v1066 = vand.u32 %v671, 4294901760
    %1067 = vmatpush1.msra.mxu0 %v1066
    %1068 = vmatprep.subr.mxu0 0.0
    %v1069 = vand.u32 %v672, 4294901760
    %1070 = vmatpush1.msra.mxu0 %v1069
    %1071 = vmatprep.subr.mxu0 0.0
    %1072 = vmatpush1.msra.mxu0 0.0
    %1073 = vmatprep.subr.mxu0 0.0
    %1074 = vmatpush1.msra.mxu0 0.0
    %1075 = vmatprep.subr.mxu0 0.0
    %1076 = vmatpush1.msra.mxu0 0.0
    %1077 = vmatprep.subr.mxu0 0.0
    %1078 = vmatpush1.msra.mxu0 0.0
    %1079 = vmatprep.subr.mxu0 0.0
    %1080 = vmatpush1.msra.mxu0 0.0
    %1081 = vmatprep.subr.mxu0 0.0
    %1082 = vmatpush1.msra.mxu0 0.0
    %1083 = vmatprep.subr.mxu0 0.0
    %1084 = vmatpush1.msra.mxu0 0.0
    %1085 = vmatprep.subr.mxu0 0.0
    %1086 = vmatpush1.msra.mxu0 0.0
    %1087 = vmatprep.subr.mxu0 0.0
    %1088 = vmatpush1.msra.mxu0 0.0
    %1089 = vmatprep.subr.mxu0 0.0
    %1090 = vmatpush1.msra.mxu0 0.0
    %1091 = vmatprep.subr.mxu0 0.0
    %1092 = vmatpush1.msra.mxu0 0.0
    %1093 = vmatprep.subr.mxu0 0.0
    %1094 = vmatpush1.msra.mxu0 0.0
    %1095 = vmatprep.subr.mxu0 0.0
    %1096 = vmatpush1.msra.mxu0 0.0
    %1097 = vmatprep.subr.mxu0 0.0
    %1098 = vmatpush1.msra.mxu0 0.0
    %1099 = vmatprep.subr.mxu0 0.0
    %1100 = vmatpush1.msra.mxu0 0.0
    %1101 = vmatprep.subr.mxu0 0.0
    %1102 = vmatpush1.msra.mxu0 0.0
    %1103 = vmatprep.mubr.f32.mxu0 0.0
    %v1104 = vand.u32 %v656, 4294901760
    %v1105 = vsub.f32 %v656, %v1104
    %v1106 = vand.u32 %v1105, 4294901760
    %1107 = vmatmul.mubr.f32.gmra.mrb[0].mxu0 %v1106
    %v1108 = vpop.f32.mrb[0].mxu0
    %v1109 = vadd.f32 %v1020, %v1108
    %v1110 = vpop.f32.mrb[0].mxu0
    %1111 = vdwg.mxu0
    %1112 = vmatprep.subr.mxu0 0.0
    %v1113 = vand.u32 %v657, 4294901760
    %v1114 = vsub.f32 %v657, %v1113
    %v1115 = vand.u32 %v1114, 4294901760
    %1116 = vmatpush1.msra.mxu0 %v1115
    %1117 = vmatprep.subr.mxu0 0.0
    %v1118 = vand.u32 %v658, 4294901760
    %v1119 = vsub.f32 %v658, %v1118
    %v1120 = vand.u32 %v1119, 4294901760
    %1121 = vmatpush1.msra.mxu0 %v1120
    %1122 = vmatprep.subr.mxu0 0.0
    %v1123 = vand.u32 %v659, 4294901760
    %v1124 = vsub.f32 %v659, %v1123
    %v1125 = vand.u32 %v1124, 4294901760
    %1126 = vmatpush1.msra.mxu0 %v1125
    %1127 = vmatprep.subr.mxu0 0.0
    %v1128 = vand.u32 %v660, 4294901760
    %v1129 = vsub.f32 %v660, %v1128
    %v1130 = vand.u32 %v1129, 4294901760
    %1131 = vmatpush1.msra.mxu0 %v1130
    %1132 = vmatprep.subr.mxu0 0.0
    %v1133 = vand.u32 %v661, 4294901760
    %v1134 = vsub.f32 %v661, %v1133
    %v1135 = vand.u32 %v1134, 4294901760
    %1136 = vmatpush1.msra.mxu0 %v1135
    %1137 = vmatprep.subr.mxu0 0.0
    %v1138 = vand.u32 %v662, 4294901760
    %v1139 = vsub.f32 %v662, %v1138
    %v1140 = vand.u32 %v1139, 4294901760
    %1141 = vmatpush1.msra.mxu0 %v1140
    %1142 = vmatprep.subr.mxu0 0.0
    %v1143 = vand.u32 %v663, 4294901760
    %v1144 = vsub.f32 %v663, %v1143
    %v1145 = vand.u32 %v1144, 4294901760
    %1146 = vmatpush1.msra.mxu0 %v1145
    %1147 = vmatprep.subr.mxu0 0.0
    %v1148 = vand.u32 %v664, 4294901760
    %v1149 = vsub.f32 %v664, %v1148
    %v1150 = vand.u32 %v1149, 4294901760
    %1151 = vmatpush1.msra.mxu0 %v1150
    %1152 = vmatprep.subr.mxu0 0.0
    %v1153 = vand.u32 %v665, 4294901760
    %v1154 = vsub.f32 %v665, %v1153
    %v1155 = vand.u32 %v1154, 4294901760
    %1156 = vmatpush1.msra.mxu0 %v1155
    %1157 = vmatprep.subr.mxu0 0.0
    %v1158 = vand.u32 %v666, 4294901760
    %v1159 = vsub.f32 %v666, %v1158
    %v1160 = vand.u32 %v1159, 4294901760
    %1161 = vmatpush1.msra.mxu0 %v1160
    %1162 = vmatprep.subr.mxu0 0.0
    %v1163 = vand.u32 %v667, 4294901760
    %v1164 = vsub.f32 %v667, %v1163
    %v1165 = vand.u32 %v1164, 4294901760
    %1166 = vmatpush1.msra.mxu0 %v1165
    %1167 = vmatprep.subr.mxu0 0.0
    %v1168 = vand.u32 %v668, 4294901760
    %v1169 = vsub.f32 %v668, %v1168
    %v1170 = vand.u32 %v1169, 4294901760
    %1171 = vmatpush1.msra.mxu0 %v1170
    %1172 = vmatprep.subr.mxu0 0.0
    %v1173 = vand.u32 %v669, 4294901760
    %v1174 = vsub.f32 %v669, %v1173
    %v1175 = vand.u32 %v1174, 4294901760
    %1176 = vmatpush1.msra.mxu0 %v1175
    %1177 = vmatprep.subr.mxu0 0.0
    %v1178 = vand.u32 %v670, 4294901760
    %v1179 = vsub.f32 %v670, %v1178
    %v1180 = vand.u32 %v1179, 4294901760
    %1181 = vmatpush1.msra.mxu0 %v1180
    %1182 = vmatprep.subr.mxu0 0.0
    %v1183 = vand.u32 %v671, 4294901760
    %v1184 = vsub.f32 %v671, %v1183
    %v1185 = vand.u32 %v1184, 4294901760
    %1186 = vmatpush1.msra.mxu0 %v1185
    %1187 = vmatprep.subr.mxu0 0.0
    %v1188 = vand.u32 %v672, 4294901760
    %v1189 = vsub.f32 %v672, %v1188
    %v1190 = vand.u32 %v1189, 4294901760
    %1191 = vmatpush1.msra.mxu0 %v1190
    %1192 = vmatprep.subr.mxu0 0.0
    %1193 = vmatpush1.msra.mxu0 0.0
    %1194 = vmatprep.subr.mxu0 0.0
    %1195 = vmatpush1.msra.mxu0 0.0
    %1196 = vmatprep.subr.mxu0 0.0
    %1197 = vmatpush1.msra.mxu0 0.0
    %1198 = vmatprep.subr.mxu0 0.0
    %1199 = vmatpush1.msra.mxu0 0.0
    %1200 = vmatprep.subr.mxu0 0.0
    %1201 = vmatpush1.msra.mxu0 0.0
    %1202 = vmatprep.subr.mxu0 0.0
    %1203 = vmatpush1.msra.mxu0 0.0
    %1204 = vmatprep.subr.mxu0 0.0
    %1205 = vmatpush1.msra.mxu0 0.0
    %1206 = vmatprep.subr.mxu0 0.0
    %1207 = vmatpush1.msra.mxu0 0.0
    %1208 = vmatprep.subr.mxu0 0.0
    %1209 = vmatpush1.msra.mxu0 0.0
    %1210 = vmatprep.subr.mxu0 0.0
    %1211 = vmatpush1.msra.mxu0 0.0
    %1212 = vmatprep.subr.mxu0 0.0
    %1213 = vmatpush1.msra.mxu0 0.0
    %1214 = vmatprep.subr.mxu0 0.0
    %1215 = vmatpush1.msra.mxu0 0.0
    %1216 = vmatprep.subr.mxu0 0.0
    %1217 = vmatpush1.msra.mxu0 0.0
    %1218 = vmatprep.subr.mxu0 0.0
    %1219 = vmatpush1.msra.mxu0 0.0
    %1220 = vmatprep.subr.mxu0 0.0
    %1221 = vmatpush1.msra.mxu0 0.0
    %1222 = vmatprep.subr.mxu0 0.0
    %1223 = vmatpush1.msra.mxu0 0.0
    %1224 = vmatprep.mubr.f32.mxu0 0.0
    %v1225 = vand.u32 %v656, 4294901760
    %1226 = vmatmul.mubr.f32.gmra.mrb[0].mxu0 %v1225
    %v1227 = vpop.f32.mrb[0].mxu0
    %v1228 = vadd.f32 %v1109, %v1227
    %v1229 = vpop.f32.mrb[0].mxu0
    %1230 = vdwg.mxu0
    %1231 = vmatprep.subr.mxu0 0.0
    %v1232 = vand.u32 %v657, 4294901760
    %1233 = vmatpush1.msra.mxu0 %v1232
    %1234 = vmatprep.subr.mxu0 0.0
    %v1235 = vand.u32 %v658, 4294901760
    %1236 = vmatpush1.msra.mxu0 %v1235
    %1237 = vmatprep.subr.mxu0 0.0
    %v1238 = vand.u32 %v659, 4294901760
    %1239 = vmatpush1.msra.mxu0 %v1238
    %1240 = vmatprep.subr.mxu0 0.0
    %v1241 = vand.u32 %v660, 4294901760
    %1242 = vmatpush1.msra.mxu0 %v1241
    %1243 = vmatprep.subr.mxu0 0.0
    %v1244 = vand.u32 %v661, 4294901760
    %1245 = vmatpush1.msra.mxu0 %v1244
    %1246 = vmatprep.subr.mxu0 0.0
    %v1247 = vand.u32 %v662, 4294901760
    %1248 = vmatpush1.msra.mxu0 %v1247
    %1249 = vmatprep.subr.mxu0 0.0
    %v1250 = vand.u32 %v663, 4294901760
    %1251 = vmatpush1.msra.mxu0 %v1250
    %1252 = vmatprep.subr.mxu0 0.0
    %v1253 = vand.u32 %v664, 4294901760
    %1254 = vmatpush1.msra.mxu0 %v1253
    %1255 = vmatprep.subr.mxu0 0.0
    %v1256 = vand.u32 %v665, 4294901760
    %1257 = vmatpush1.msra.mxu0 %v1256
    %1258 = vmatprep.subr.mxu0 0.0
    %v1259 = vand.u32 %v666, 4294901760
    %1260 = vmatpush1.msra.mxu0 %v1259
    %1261 = vmatprep.subr.mxu0 0.0
    %v1262 = vand.u32 %v667, 4294901760
    %1263 = vmatpush1.msra.mxu0 %v1262
    %1264 = vmatprep.subr.mxu0 0.0
    %v1265 = vand.u32 %v668, 4294901760
    %1266 = vmatpush1.msra.mxu0 %v1265
    %1267 = vmatprep.subr.mxu0 0.0
    %v1268 = vand.u32 %v669, 4294901760
    %1269 = vmatpush1.msra.mxu0 %v1268
    %1270 = vmatprep.subr.mxu0 0.0
    %v1271 = vand.u32 %v670, 4294901760
    %1272 = vmatpush1.msra.mxu0 %v1271
    %1273 = vmatprep.subr.mxu0 0.0
    %v1274 = vand.u32 %v671, 4294901760
    %1275 = vmatpush1.msra.mxu0 %v1274
    %1276 = vmatprep.subr.mxu0 0.0
    %v1277 = vand.u32 %v672, 4294901760
    %1278 = vmatpush1.msra.mxu0 %v1277
    %1279 = vmatprep.subr.mxu0 0.0
    %1280 = vmatpush1.msra.mxu0 0.0
    %1281 = vmatprep.subr.mxu0 0.0
    %1282 = vmatpush1.msra.mxu0 0.0
    %1283 = vmatprep.subr.mxu0 0.0
    %1284 = vmatpush1.msra.mxu0 0.0
    %1285 = vmatprep.subr.mxu0 0.0
    %1286 = vmatpush1.msra.mxu0 0.0
    %1287 = vmatprep.subr.mxu0 0.0
    %1288 = vmatpush1.msra.mxu0 0.0
    %1289 = vmatprep.subr.mxu0 0.0
    %1290 = vmatpush1.msra.mxu0 0.0
    %1291 = vmatprep.subr.mxu0 0.0
    %1292 = vmatpush1.msra.mxu0 0.0
    %1293 = vmatprep.subr.mxu0 0.0
    %1294 = vmatpush1.msra.mxu0 0.0
    %1295 = vmatprep.subr.mxu0 0.0
    %1296 = vmatpush1.msra.mxu0 0.0
    %1297 = vmatprep.subr.mxu0 0.0
    %1298 = vmatpush1.msra.mxu0 0.0
    %1299 = vmatprep.subr.mxu0 0.0
    %1300 = vmatpush1.msra.mxu0 0.0
    %1301 = vmatprep.subr.mxu0 0.0
    %1302 = vmatpush1.msra.mxu0 0.0
    %1303 = vmatprep.subr.mxu0 0.0
    %1304 = vmatpush1.msra.mxu0 0.0
    %1305 = vmatprep.subr.mxu0 0.0
    %1306 = vmatpush1.msra.mxu0 0.0
    %1307 = vmatprep.subr.mxu0 0.0
    %1308 = vmatpush1.msra.mxu0 0.0
    %1309 = vmatprep.subr.mxu0 0.0
    %1310 = vmatpush1.msra.mxu0 0.0
    %1311 = vmatprep.mubr.f32.mxu0 0.0
    %v1312 = vand.u32 %v656, 4294901760
    %1313 = vmatmul.mubr.f32.gmra.mrb[0].mxu0 %v1312
    %v1314 = vpop.f32.mrb[0].mxu0
    %v1315 = vadd.f32 %v1228, %v1314
    %v1316 = vpop.f32.mrb[0].mxu0
    %1317 = vdwg.mxu0
    %vm1318 = vcmask 523264
    %1319 = vst.msk [vmem:[#allocation5] sm:$0xff] %vm1318, %v1315
    // Predicated region
    $region18: #{time_embedding_forward.1} parent=1 // pred_check
      _
    $region19: #{time_embedding_forward.1} parent=1 // pred_check_branch
      %1321 = sbr.rel (0) target = $region21
    $region20: #{time_embedding_forward.1} parent=1 // pred_region
      %s1323 = ssub.s32 128, 128
      %1324 = vsyncadd [#allocation4], %s1323
      %s1326 = sshll.u32 [#allocation5], 4
      %s1327 = int_to_ptr.vmem [resolvable:$true] %s1326
      %1329 = dma.vmem_to_hbm [thread:$0]  %s1327, 128, %s3, [#allocation4]
    $region21: #{time_embedding_forward.1} parent=1 // pred_fallthru
      _
    // Predicated region
    $region22: #{time_embedding_forward.1} parent=1 // pred_check
      _
    $region23: #{time_embedding_forward.1} parent=1 // pred_check_branch
      %1331 = sbr.rel (0) target = $region25
    $region24: #{time_embedding_forward.1} parent=1 // pred_region
      %1332 = dma.done [#allocation4], 128
    $region25: #{time_embedding_forward.1} parent=1 // pred_fallthru
      _
    %1333 = vsyncpa [#allocation3], 1
    %1334 = vsyncpa [#allocation4], 1

</llo_original>
